<compile_context>
chip_gen: v6e
topology: v6e:2x2x1
jax: 0.10.0
libtpu: 0.0.40
codegen_flags: <defaults>
</compile_context>

<pallas_src>
import functools

import jax
import jax.numpy as jnp
from jax.experimental import pallas as pl
from jax.experimental.pallas import tpu as pltpu

EPS = 1e-5
LANES = 128


def _pad_to(n, m):
    return ((n + m - 1) // m) * m


def _pick_tile_b(B):
    # Largest batch tile that divides B (keeps BN stats exact: no padded rows).
    if B <= 1024:
        return B
    for t in (1024, 512, 256, 128, 64, 32, 16, 8):
        if B % t == 0:
            return t
    # TODO(synk): handle ragged B (pad rows and mask them out of the BN stats).
    return B


# ---------------- pass 1: per-feature sum / sum-of-squares over the batch ----
def bn_stats_kernel(x_ref, w1_ref, stats_ref):
    @pl.when(pl.program_id(0) == 0)
    def _():
        stats_ref[...] = jnp.zeros_like(stats_ref)

    # bf16 operands, f32 MXU accumulation. Linear-1 bias is omitted on purpose:
    # train-mode BatchNorm subtracts the batch mean, so it cancels exactly.
    h = jnp.dot(x_ref[...], w1_ref[...], preferred_element_type=jnp.float32)
    s = jnp.sum(h, axis=0, keepdims=True)
    sq = jnp.sum(h * h, axis=0, keepdims=True)
    stats_ref[...] += jnp.concatenate([s, sq], axis=0)


# ---------------- pass 2: recompute x@w1, BN + ReLU, Linear-2 ----------------
def mlp_apply_kernel(x_ref, w1_ref, stats_ref, vec_ref, w2_ref, o_ref,
                     *, inv_n, hp, cp):
    h = jnp.dot(x_ref[...], w1_ref[...], preferred_element_type=jnp.float32)

    # Fused BN scale/shift from the global batch stats (all f32; v5e has no
    # bf16 VPU/EUP). var clamped to avoid negative E[x^2]-E[x]^2 cancellation.
    stats = stats_ref[...]
    mean = stats[0:1, :] * inv_n
    var = jnp.maximum(stats[1:2, :] * inv_n - mean * mean, 0.0)
    vec = vec_ref[...]                     # packed [gamma; beta; b2]
    gamma = vec[0:1, :hp]
    beta = vec[1:2, :hp]
    scale = gamma * jax.lax.rsqrt(var + EPS)   # EUP rsqrt
    shift = beta - mean * scale
    h = jnp.maximum(h * scale + shift, 0.0)

    # Linear-2 into the lane-padded output (padding cols of w2 / b2 are zero).
    b2 = vec[2:3, :cp]
    o_ref[...] = (
        jnp.dot(h.astype(w2_ref.dtype), w2_ref[...],
                preferred_element_type=jnp.float32) + b2
    ).astype(o_ref.dtype)


# ---------------- one-time parameter prep (hoisted out of the call path) -----
def prepare_params(w1, b1, gamma, beta, w2, b2, *, compute_dtype=jnp.bfloat16):
    # TODO(synk): restore b1 if eval-mode (running-stats) BatchNorm is needed;
    # it only cancels under train-mode batch-mean subtraction.
    del b1
    Cin, H = w1.shape
    Cout = w2.shape[1]
    Hp = _pad_to(H, LANES)
    Cp = _pad_to(Cout, LANES)
    P = max(Hp, Cp)

    w1p = jnp.zeros((Cin, Hp), compute_dtype).at[:, :H].set(w1.astype(compute_dtype))
    w2p = jnp.zeros((Hp, Cp), compute_dtype).at[:H, :Cout].set(w2.astype(compute_dtype))
    vec = jnp.zeros((3, P), jnp.float32)
    vec = vec.at[0, :H].set(gamma.reshape(-1).astype(jnp.float32))
    vec = vec.at[1, :H].set(beta.reshape(-1).astype(jnp.float32))
    vec = vec.at[2, :Cout].set(b2.reshape(-1).astype(jnp.float32))
    return dict(w1=w1p, w2=w2p, vec=vec, H=H, Hp=Hp, Cout=Cout, Cp=Cp, P=P,
                compute_dtype=compute_dtype)


def mlp_head(x, prep):
    B, Cin = x.shape
    Hp, Cp, P = prep["Hp"], prep["Cp"], prep["P"]
    cdt = prep["compute_dtype"]
    w1, w2, vec = prep["w1"], prep["w2"], prep["vec"]
    out_dtype = x.dtype

    xq = x.astype(cdt)               # bf16 activations: fast MXU path, half DMA
    TB = _pick_tile_b(B)
    grid = (B // TB,)

    xb = jnp.dtype(cdt).itemsize
    ob = jnp.dtype(out_dtype).itemsize
    # VMEM plan: double-buffered x/out tiles + resident weights/stats/vectors,
    # generous headroom, capped well under v7x's 64 MiB physical VMEM.
    est = (2 * TB * Cin * xb + 2 * TB * Cp * ob
           + Cin * Hp * xb + Hp * Cp * xb + 2 * Hp * 4 + 3 * P * 4)
    vmem_bytes = int(min(max(4 * est, 8 << 20), 48 << 20))

    def whole(shape):
        return pl.BlockSpec(shape, lambda i: (0, 0))   # resident, single DMA

    # ---- pass 1: BN statistics (reduction over batch tiles) ----
    stats = pl.pallas_call(
        bn_stats_kernel,
        out_shape=jax.ShapeDtypeStruct((2, Hp), jnp.float32),
        grid_spec=pltpu.PrefetchScalarGridSpec(
            num_scalar_prefetch=0,
            grid=grid,
            in_specs=[pl.BlockSpec((TB, Cin), lambda i: (i, 0)),
                      whole((Cin, Hp))],
            out_specs=pl.BlockSpec((2, Hp), lambda i: (0, 0)),
        ),
        compiler_params=pltpu.CompilerParams(
            dimension_semantics=("arbitrary",),
            vmem_limit_bytes=vmem_bytes),
    )(xq, w1)

    # ---- pass 2: normalize + ReLU + Linear-2, independent batch tiles ----
    kern = functools.partial(mlp_apply_kernel, inv_n=1.0 / B, hp=Hp, cp=Cp)
    cost = pl.CostEstimate(
        flops=2 * B * (Cin * Hp + Hp * Cp),
        transcendentals=(B // TB) * Hp,
        bytes_accessed=(xq.size * xb + w1.size * xb + w2.size * xb
                        + stats.size * 4 + vec.size * 4 + B * Cp * ob),
    )
    out_p = pl.pallas_call(
        kern,
        out_shape=jax.ShapeDtypeStruct((B, Cp), out_dtype),
        grid_spec=pltpu.PrefetchScalarGridSpec(
            num_scalar_prefetch=0,
            grid=grid,
            in_specs=[pl.BlockSpec((TB, Cin), lambda i: (i, 0)),
                      whole((Cin, Hp)),
                      whole((2, Hp)),
                      whole((3, P)),
                      whole((Hp, Cp))],
            out_specs=pl.BlockSpec((TB, Cp), lambda i: (i, 0)),
        ),
        compiler_params=pltpu.CompilerParams(
            dimension_semantics=("parallel",),
            vmem_limit_bytes=vmem_bytes),
        cost_estimate=cost,
    )(xq, w1, stats, vec, w2)
    return out_p[:, :prep["Cout"]]


# ---------------- init + pure-JAX reference ----------------------------------
def init_params(key, in_channels, hidden_channels, out_channels):
    # nn.Linear-style init: U(-1/sqrt(fan_in), +1/sqrt(fan_in)).
    k1, k2, k3, k4 = jax.random.split(key, 4)
    lim1 = 1.0 / (in_channels ** 0.5)
    lim2 = 1.0 / (hidden_channels ** 0.5)
    w1 = jax.random.uniform(k1, (in_channels, hidden_channels), jnp.float32, -lim1, lim1)
    b1 = jax.random.uniform(k2, (1, hidden_channels), jnp.float32, -lim1, lim1)
    w2 = jax.random.uniform(k3, (hidden_channels, out_channels), jnp.float32, -lim2, lim2)
    b2 = jax.random.uniform(k4, (1, out_channels), jnp.float32, -lim2, lim2)
    gamma = jnp.ones((1, hidden_channels), jnp.float32)   # BatchNorm1d weight
    beta = jnp.zeros((1, hidden_channels), jnp.float32)   # BatchNorm1d bias
    return w1, b1, gamma, beta, w2, b2


def reference(x, w1, b1, gamma, beta, w2, b2):
    h = x @ w1 + b1
    mean = h.mean(axis=0, keepdims=True)
    var = ((h - mean) ** 2).mean(axis=0, keepdims=True)
    h = (h - mean) / jnp.sqrt(var + EPS) * gamma + beta
    h = jnp.maximum(h, 0.0)
    return h @ w2 + b2


if __name__ == "__main__":
    key = jax.random.PRNGKey(0)
    kx, kp = jax.random.split(key)

    B, Cin, H, Cout = 8, 32, 64, 16
    x = jax.random.normal(kx, (B, Cin), jnp.float32)
    w1, b1, gamma, beta, w2, b2 = init_params(kp, Cin, H, Cout)

    prep = prepare_params(w1, b1, gamma, beta, w2, b2)
    out = mlp_head(x, prep)
    jax.block_until_ready(out)

    # Reference in f32 from the same bf16-quantized operands the kernel sees,
    # so the check measures kernel correctness rather than bf16 quantization.
    # (Reference keeps b1; the kernel drops it — cancels under train-mode BN.)
    x_q = x.astype(jnp.bfloat16).astype(jnp.float32)
    w1_q = prep["w1"][:, :H].astype(jnp.float32)
    w2_q = prep["w2"][:H, :Cout].astype(jnp.float32)
    ref = reference(x_q, w1_q, b1, gamma, beta, w2_q, b2)

    assert out.shape == (B, Cout)
    assert jnp.allclose(out, ref, atol=2e-2, rtol=2e-2), "mismatch vs JAX reference"
    print("KERNEL_OK")
</pallas_src>

<mosaic_0001>
module attributes {stable_mosaic.version = 11 : i64} {
  func.func @bn_stats_kernel(%arg0: i32, %arg1: memref<8x32xbf16, #tpu.memory_space<vmem>>, %arg2: memref<32x128xbf16, #tpu.memory_space<vmem>>, %arg3: memref<2x128xf32, #tpu.memory_space<vmem>>) attributes {dimension_semantics = [#tpu.dimension_semantics<arbitrary>], iteration_bounds = array<i64: 1>, scalar_prefetch = 0 : i64, scratch_operands = 0 : i64, tpu.core_type = #tpu.core_type<tc>, window_params = [{transform_indices = @transform_0, window_bounds = array<i64: 8, 32>}, {pipeline_mode = #tpu.pipeline_mode<synchronous>, transform_indices = @transform_1, window_bounds = array<i64: 32, 128>}, {pipeline_mode = #tpu.pipeline_mode<synchronous>, transform_indices = @transform_2, window_bounds = array<i64: 2, 128>}]} {
    %c0_i32 = arith.constant 0 : i32
    %0 = arith.cmpi eq, %arg0, %c0_i32 : i32
    %1 = arith.extui %0 : i1 to i32
    %c0_i32_0 = arith.constant 0 : i32
    %2 = arith.cmpi ne, %1, %c0_i32_0 : i32
    scf.if %2 {
      %cst_10 = arith.constant 0.000000e+00 : f32
      %15 = vector.broadcast %cst_10 : f32 to vector<2x128xf32>
      %c0_11 = arith.constant 0 : index
      %c0_12 = arith.constant 0 : index
      %16 = vector.load %arg3[%c0_11, %c0_12] : memref<2x128xf32, #tpu.memory_space<vmem>>, vector<2x128xf32>
      tpu.vector_store %arg3[%c0_11, %c0_12], %15 {strides = array<i32>} : memref<2x128xf32, #tpu.memory_space<vmem>>, vector<2x128xf32>,
    } else {
    }
    %c0 = arith.constant 0 : index
    %c0_1 = arith.constant 0 : index
    %3 = vector.load %arg1[%c0, %c0_1] : memref<8x32xbf16, #tpu.memory_space<vmem>>, vector<8x32xbf16>
    %c0_2 = arith.constant 0 : index
    %c0_3 = arith.constant 0 : index
    %4 = vector.load %arg2[%c0_2, %c0_3] : memref<32x128xbf16, #tpu.memory_space<vmem>>, vector<32x128xbf16>
    %cst = arith.constant dense<0.000000e+00> : vector<8x128xf32>
    %5 = tpu.matmul %3, %4, %cst {dimension_numbers = #tpu.dot_dimension_numbers<[1], [0], [0], [1], [0, 0, 1, 1], [], []>} : vector<8x32xbf16>, vector<32x128xbf16>, vector<8x128xf32> -> vector<8x128xf32>
    %cst_4 = arith.constant dense<0.000000e+00> : vector<128xf32>
    %6 = vector.multi_reduction <add>, %5, %cst_4 [0] : vector<8x128xf32> to vector<128xf32>
    %7 = vector.shape_cast %6 : vector<128xf32> to vector<1x128xf32>
    %8 = arith.mulf %5, %5 : vector<8x128xf32>
    %cst_5 = arith.constant dense<0.000000e+00> : vector<128xf32>
    %9 = vector.multi_reduction <add>, %8, %cst_5 [0] : vector<8x128xf32> to vector<128xf32>
    %10 = vector.shape_cast %9 : vector<128xf32> to vector<1x128xf32>
    %c0_6 = arith.constant 0 : index
    %c0_7 = arith.constant 0 : index
    %11 = vector.load %arg3[%c0_6, %c0_7] : memref<2x128xf32, #tpu.memory_space<vmem>>, vector<2x128xf32>
    %12 = tpu.concatenate %7, %10 in 0 : vector<1x128xf32>, vector<1x128xf32> -> vector<2x128xf32>
    %13 = arith.addf %11, %12 : vector<2x128xf32>
    %c0_8 = arith.constant 0 : index
    %c0_9 = arith.constant 0 : index
    %14 = vector.load %arg3[%c0_8, %c0_9] : memref<2x128xf32, #tpu.memory_space<vmem>>, vector<2x128xf32>
    tpu.vector_store %arg3[%c0_8, %c0_9], %13 {strides = array<i32>} : memref<2x128xf32, #tpu.memory_space<vmem>>, vector<2x128xf32>,
    return
  }
  func.func @transform_0(%arg0: i32) -> (i32, i32) {
    %c0_i32 = arith.constant 0 : i32
    %c0_i32_0 = arith.constant 0 : i32
    return %arg0, %c0_i32 : i32, i32
  }
  func.func @transform_1(%arg0: i32) -> (i32, i32) {
    %c0_i32 = arith.constant 0 : i32
    %c0_i32_0 = arith.constant 0 : i32
    %c0_i32_1 = arith.constant 0 : i32
    return %c0_i32, %c0_i32_0 : i32, i32
  }
  func.func @transform_2(%arg0: i32) -> (i32, i32) {
    %c0_i32 = arith.constant 0 : i32
    %c0_i32_0 = arith.constant 0 : i32
    %c0_i32_1 = arith.constant 0 : i32
    return %c0_i32, %c0_i32_0 : i32, i32
  }
}

</mosaic_0001>

<llo_original>
// kernel: tpu_custom_call.1
$region0: #{tpu_custom_call.1}
  #allocation0 [shape = 'u32[]', space=smem, size = 0x4, offset = 0x4, fixed_abs, tag = 'smem constant byte address 0x4 - core index']
  #allocation1 [shape = 'u32[144,128]{1,0:T(1,128)}', space=vmem, size = 0x12000, scoped, tag = 'internal scratch']
  %s0 = inlined_call_operand.hbm [shape: bf16[8,32], index: 0, kind: input, shape index: {}]
  %s1 = inlined_call_operand.hbm [shape: bf16[32,128], index: 1, kind: input, shape index: {}]
  %s2 = inlined_call_operand.hbm [shape: f32[2,128], index: 2, kind: output, shape index: {}]
  %s3 = sld [smem:[#allocation0]]
  $region30: #{tpu_custom_call.1} parent=0
    _
  %s5 = ssub.s32 1, %s3
  %s6 = scalar_select 0, %s5, %s3
  $region1: #{tpu_custom_call.1} parent=0
    #allocation2 [shape = 'u8[2048]{0}', space=vmem, size = 0x800, scoped, tag = 'input window, operand 0, single buffered']
    #allocation3 [shape = 's32[1]{0}', space=sflag, size = 0x4, scoped, tag = 'scoped memory for tpu_custom_call.1']
    #allocation4 [shape = 's32[1]{0}', space=sflag, size = 0x4, scoped, tag = 'scoped memory for tpu_custom_call.1']
    #allocation5 [shape = 'u8[8192]{0}', space=vmem, size = 0x2000, scoped, tag = 'input window, operand 1, single buffered']
    #allocation6 [shape = 's32[1]{0}', space=sflag, size = 0x4, scoped, tag = 'scoped memory for tpu_custom_call.1']
    #allocation7 [shape = 'u8[1024]{0}', space=vmem, size = 0x400, scoped, tag = 'output window, operand 0, single buffered']
    %7 = vsyncpa [#allocation3], 0
    %8 = vsyncpa [#allocation6], 0
    %9 = vsyncpa [#allocation4], 0
    // Predicated region
    $region2: #{tpu_custom_call.1} parent=1 // pred_check
      _
    $region3: #{tpu_custom_call.1} parent=1 // pred_check_branch
      %11 = sbr.rel (0) target = $region5
    $region4: #{tpu_custom_call.1} parent=1 // pred_region
      %s13 = ssub.s32 64, 64
      %14 = vsyncadd [#allocation3], %s13
      %s16 = sshll.u32 [#allocation2], 4
      %s17 = int_to_ptr.vmem [resolvable:$true] %s16
      %19 = dma.hbm_to_vmem [thread:$0]  %s0, 64, %s17, [#allocation3]
    $region5: #{tpu_custom_call.1} parent=1 // pred_fallthru
      _
    // Predicated region
    $region6: #{tpu_custom_call.1} parent=1 // pred_check
      _
    $region7: #{tpu_custom_call.1} parent=1 // pred_check_branch
      %21 = sbr.rel (0) target = $region9
    $region8: #{tpu_custom_call.1} parent=1 // pred_region
      %s23 = ssub.s32 256, 256
      %24 = vsyncadd [#allocation6], %s23
      %s25 = sshll.u32 [#allocation5], 4
      %s26 = int_to_ptr.vmem [resolvable:$true] %s25
      %31 = dma.hbm_to_vmem [thread:$0]  %s1, 256, %s26, [#allocation6], 64, 64, 4
    $region9: #{tpu_custom_call.1} parent=1 // pred_fallthru
      _
    // Predicated region
    $region10: #{tpu_custom_call.1} parent=1 // pred_check
      _
    $region11: #{tpu_custom_call.1} parent=1 // pred_check_branch
      %33 = sbr.rel (0) target = $region13
    $region12: #{tpu_custom_call.1} parent=1 // pred_region
      %34 = dma.done [#allocation3], 64
    $region13: #{tpu_custom_call.1} parent=1 // pred_fallthru
      _
    // Predicated region
    $region14: #{tpu_custom_call.1} parent=1 // pred_check
      _
    $region15: #{tpu_custom_call.1} parent=1 // pred_check_branch
      %36 = sbr.rel (0) target = $region17
    $region16: #{tpu_custom_call.1} parent=1 // pred_region
      %37 = dma.done [#allocation6], 256
    $region17: #{tpu_custom_call.1} parent=1 // pred_fallthru
      _
    %p39 = scmp.eq.s32.totalorder 0, 0
    // Predicated region
    $region18: #{tpu_custom_call.1} parent=1 // pred_check
      %p40 = pneg %p39
    $region19: #{tpu_custom_call.1} parent=1 // pred_check_branch
      %42 = sbr.rel (%p40) target = $region21
    $region20: #{tpu_custom_call.1} parent=1 // pred_region
      %43 = vst [vmem:[#allocation7] sm:$0x3] 0.0
    $region21: #{tpu_custom_call.1} parent=1 // pred_fallthru
      _
    %v44 = vld [vmem:[#allocation2] sm:$0xf]
    %v45 = vld [vmem:[#allocation5] sm:$0xf]
    %v46 = vld [vmem:[#allocation5 + $0x4] sm:$0xf]
    %v47 = vld [vmem:[#allocation5 + $0x8] sm:$0xf]
    %v48 = vld [vmem:[#allocation5 + $0xc] sm:$0xf]
    %v53 = vunpack.c.l.b16 %v45
    %v54 = vunpack.c.l.b16 %v46
    %v55 = vunpack.c.l.b16 %v47
    %v56 = vunpack.c.l.b16 %v48
    %v57 = vpack.c.b16 %v54, %v53
    %v58 = vpack.c.b16 %v56, %v55
    %vm61 = vcmask 261120
    %v63 = vsel %vm61, %v44, 0
    %65 = vmatprep.subr.bf16.mxu0 0
    %66 = vmatpush1.bf16.msra.mxu0 0
    %67 = vmatprep.subr.bf16.mxu0 0
    %68 = vmatpush1.bf16.msra.mxu0 0
    %69 = vmatprep.subr.bf16.mxu0 0
    %70 = vmatpush1.bf16.msra.mxu0 0
    %71 = vmatprep.subr.bf16.mxu0 0
    %72 = vmatpush1.bf16.msra.mxu0 0
    %73 = vmatprep.subr.bf16.mxu0 0
    %74 = vmatpush1.bf16.msra.mxu0 0
    %75 = vmatprep.subr.bf16.mxu0 0
    %76 = vmatpush1.bf16.msra.mxu0 0
    %77 = vmatprep.subr.bf16.mxu0 0
    %78 = vmatpush1.bf16.msra.mxu0 %v58
    %79 = vmatprep.subr.bf16.mxu0 0
    %80 = vmatpush1.bf16.msra.mxu0 %v57
    %81 = vmatprep.subr.bf16.mxu0 0
    %82 = vmatpush2.bf16.msra.mxu0 0
    %83 = vmatprep.subr.bf16.mxu0 0
    %84 = vmatpush2.bf16.msra.mxu0 0
    %85 = vmatprep.subr.bf16.mxu0 0
    %86 = vmatpush2.bf16.msra.mxu0 0
    %87 = vmatprep.subr.bf16.mxu0 0
    %88 = vmatpush2.bf16.msra.mxu0 0
    %89 = vmatprep.subr.bf16.mxu0 0
    %90 = vmatpush2.bf16.msra.mxu0 0
    %91 = vmatprep.subr.bf16.mxu0 0
    %92 = vmatpush2.bf16.msra.mxu0 0
    %93 = vmatprep.subr.bf16.mxu0 0
    %94 = vmatpush2.bf16.msra.mxu0 0
    %95 = vmatprep.subr.bf16.mxu0 0
    %96 = vmatpush2.bf16.msra.mxu0 0
    %97 = vmatprep.mubr.bf16.mxu0 0
    %98 = vmatmul.mubr.bf16.gmra.mxu0 %v63
    %v99 = vpop.f32.mrf.mxu0
    %v100 = vadd.f32 0.0, %v99
    %v101 = vpop.f32.mrf.mxu0
    %v102 = vpop.f32.mrf.mxu0
    %v103 = vpop.f32.mrf.mxu0
    %104 = vdwg.mxu0
    %v105 = vrot.slane %v100, 4
    %v106 = vadd.f32 %v100, %v105
    %v107 = vrot.slane %v106, 2
    %v108 = vadd.f32 %v106, %v107
    %v109 = vrot.slane %v108, 1
    %v110 = vadd.f32 %v108, %v109
    %v111 = vmul.f32 %v100, %v100
    %v112 = vrot.slane %v111, 4
    %v113 = vadd.f32 %v111, %v112
    %v114 = vrot.slane %v113, 2
    %v115 = vadd.f32 %v113, %v114
    %v116 = vrot.slane %v115, 1
    %v117 = vadd.f32 %v115, %v116
    %v118 = vld [vmem:[#allocation7] sm:$0x3]
    %vm119 = vcmask 1040384
    %v120 = vsel %vm119, %v110, %v117
    %v121 = vadd.f32 %v118, %v120
    %122 = vst [vmem:[#allocation7] sm:$0x3] %v121
    // Predicated region
    $region22: #{tpu_custom_call.1} parent=1 // pred_check
      _
    $region23: #{tpu_custom_call.1} parent=1 // pred_check_branch
      %124 = sbr.rel (0) target = $region25
    $region24: #{tpu_custom_call.1} parent=1 // pred_region
      %s126 = ssub.s32 32, 32
      %127 = vsyncadd [#allocation4], %s126
      %s129 = sshll.u32 [#allocation7], 4
      %s130 = int_to_ptr.vmem [resolvable:$true] %s129
      %132 = dma.vmem_to_hbm [thread:$0]  %s130, 32, %s2, [#allocation4]
    $region25: #{tpu_custom_call.1} parent=1 // pred_fallthru
      _
    // Predicated region
    $region26: #{tpu_custom_call.1} parent=1 // pred_check
      _
    $region27: #{tpu_custom_call.1} parent=1 // pred_check_branch
      %134 = sbr.rel (0) target = $region29
    $region28: #{tpu_custom_call.1} parent=1 // pred_region
      %135 = dma.done [#allocation4], 32
    $region29: #{tpu_custom_call.1} parent=1 // pred_fallthru
      _
    %136 = vsyncpa [#allocation3], 1
    %137 = vsyncpa [#allocation6], 1
    %138 = vsyncpa [#allocation4], 1

</llo_original>
